<compile_context>
chip_gen: v6e
topology: v6e:2x2x1
jax: 0.10.0
libtpu: 0.0.40
codegen_flags: <defaults>
</compile_context>

<pallas_src>
import functools

import jax
import jax.numpy as jnp
from jax import lax
from jax.experimental import pallas as pl
from jax.experimental.pallas import tpu as pltpu


def _upsample_nearest_kernel(x_ref, rep_ref, o_ref, *, scale: int, chunk: int,
                             n_full: int, tail: int, w_out: int, precision,
                             unroll_max: int = 8):
    """x_ref: (TR, W) input rows.  rep_ref: (chunk, chunk*scale) one-hot replication
    matrix.  o_ref: (TR, scale*W_out) output rows (metadata view of NCHW output).

    out[r, s*W_out + j*scale + t] = x[r, j]   for s, t in [0, scale).
    """
    cs = chunk * scale
    rep = rep_ref[...]

    def do_chunk(col_in, col_out, width, rep_m):
        # Load one chunk of input columns (dtype-native).
        xc = x_ref[:, pl.ds(col_in, width)].astype(rep_m.dtype)            # (TR, width)
        # W-repeat (lane axis) via MXU one-hot matmul: exact (single 1.0 per column).
        xw = jnp.dot(xc, rep_m, preferred_element_type=jnp.float32,
                     precision=precision).astype(o_ref.dtype)              # (TR, width*scale)
        # H-repeat: `scale` plain stores into the flattened output row.
        for s in range(scale):
            o_ref[:, pl.ds(s * w_out + col_out, width * scale)] = xw

    if n_full <= unroll_max:
        for ci in range(n_full):                     # short: fully unrolled
            do_chunk(ci * chunk, ci * cs, chunk, rep)
    else:
        def body(ci, carry):                         # long: bound live ranges
            do_chunk(pl.multiple_of(ci * chunk, chunk),
                     pl.multiple_of(ci * cs, cs), chunk, rep)
            return carry
        lax.fori_loop(0, n_full, body, 0)

    if tail:                                         # static ragged tail chunk
        do_chunk(n_full * chunk, n_full * cs, tail, rep[:tail, :tail * scale])


def _round_down(x, m):
    return (x // m) * m


def _round_up(x, m):
    return ((x + m - 1) // m) * m


def _tpu_defaults():
    """(target_out_bytes, vmem_cap_bytes, is_v5e) tuned per TPU generation."""
    kind = ""
    try:
        kind = (jax.devices()[0].device_kind or "").lower()
    except Exception:
        pass
    is_v5e = ("v5 lite" in kind) or ("v5e" in kind)
    is_v6 = "v6" in kind
    if is_v5e or is_v6:
        # 128 MiB physical VMEM, single TensorCore -> larger tiles amortize per-step cost.
        return 12 << 20, 64 << 20, is_v5e
    # v7x (64 MiB VMEM / TC, 2 TCs) or unknown: conservative, leave headroom.
    return 6 << 20, 48 << 20, False


def _pick_row_tile(total_rows: int, w: int, scale: int, itemsize: int,
                   target_out_bytes: int, min_steps: int = 2) -> int:
    """Row-block TR: sublane-aligned, ~target_out_bytes of output per grid step, and
    at least `min_steps` grid steps so v7x's two TensorCores both get work."""
    sub = max(8, 32 // itemsize)                       # 8 f32, 16 bf16/f16
    if total_rows < sub:
        return total_rows                              # full (tiny) extent is always legal
    out_row_bytes = w * scale * scale * itemsize       # output bytes produced per input row
    tr = max(sub, _round_down(target_out_bytes // max(1, out_row_bytes), sub))
    cap = max(sub, _round_up(pl.cdiv(total_rows, min_steps), sub))
    return min(tr, cap)


def upsample_nearest(x_nchw: jax.Array, scale: int) -> jax.Array:
    """Nearest-neighbor upsample by integer `scale` (== nn.Upsample(scale_factor=scale)).

    x_nchw: (N, C, H, W)  ->  (N, C, H*scale, W*scale)
    """
    scale = int(scale)
    if scale < 1:
        raise ValueError("scale must be a positive integer")
    if x_nchw.ndim != 4:
        raise NotImplementedError("only 4-D NCHW inputs are supported")
    if x_nchw.dtype not in (jnp.float32, jnp.bfloat16, jnp.float16):
        # TODO(synk): exact integer path (MXU one-hot matmul is not bit-exact for ints).
        raise NotImplementedError(f"unsupported dtype {x_nchw.dtype}")

    n, c, h, w = x_nchw.shape
    h_out, w_out = h * scale, w * scale
    total_rows = n * c * h

    # Free (metadata-only) views: each image row -> one row of a 2-D array; the output
    # packs the `scale` repeated rows of every input row contiguously (exact NCHW layout).
    x2 = x_nchw.reshape(total_rows, w)

    itemsize = jnp.dtype(x_nchw.dtype).itemsize
    target_out_bytes, vmem_cap, is_v5e = _tpu_defaults()
    tr = _pick_row_tile(total_rows, w, scale, itemsize, target_out_bytes)
    grid = (pl.cdiv(total_rows, tr),)

    # dtype-native & exact matmul: 0/1 weights are exact in bf16/f16; f32 needs
    # HIGHEST precision so the one-hot dot stays a bit-exact copy.
    if x_nchw.dtype == jnp.float32:
        compute_dtype, precision = jnp.float32, lax.Precision.HIGHEST
    else:
        compute_dtype, precision = x_nchw.dtype, lax.Precision.DEFAULT

    # 128-lane chunks bound MXU work at <=128 MAC/output element and keep `rep` tiny.
    # v5e + f32-HIGHEST has less MXU headroom -> halve the chunk there.
    max_chunk = 64 if (is_v5e and compute_dtype == jnp.float32) else 128
    chunk = min(w, max_chunk)
    n_full, tail = w // chunk, w % chunk

    # One-hot replication matrix rep[i, j] = (j // scale == i), built once, passed in.
    col_src = jnp.arange(chunk * scale, dtype=jnp.int32) // scale
    rep = (col_src[None, :] == jnp.arange(chunk, dtype=jnp.int32)[:, None]).astype(compute_dtype)

    in_tile = tr * w * itemsize
    out_tile = tr * scale * w_out * itemsize
    temps = 4 * tr * chunk * (1 + scale) + rep.size * itemsize        # per-chunk f32 temps + rep
    vmem_limit = int(min(vmem_cap,
                         max(32 << 20, 2 * (in_tile + out_tile) + 2 * temps + (2 << 20))))

    kernel = functools.partial(
        _upsample_nearest_kernel, scale=scale, chunk=chunk, n_full=n_full,
        tail=tail, w_out=w_out, precision=precision)

    out2 = pl.pallas_call(
        kernel,
        out_shape=jax.ShapeDtypeStruct((total_rows, scale * w_out), x_nchw.dtype),
        grid_spec=pltpu.PrefetchScalarGridSpec(
            num_scalar_prefetch=0,
            grid=grid,
            in_specs=[
                pl.BlockSpec((tr, w), lambda i: (i, 0)),
                pl.BlockSpec((chunk, chunk * scale), lambda i: (0, 0)),   # constant -> fetched once
            ],
            out_specs=pl.BlockSpec((tr, scale * w_out), lambda i: (i, 0)),
        ),
        compiler_params=pltpu.CompilerParams(
            dimension_semantics=("parallel",),   # v7x: shard row blocks over its 2 TCs
            vmem_limit_bytes=vmem_limit,
        ),
    )(x2, rep)

    # Free metadata reshape back to NCHW.
    return out2.reshape(n, c, h_out, w_out)


def _reference_upsample(x_nchw: jax.Array, scale: int) -> jax.Array:
    y = jnp.repeat(x_nchw, scale, axis=2)
    y = jnp.repeat(y, scale, axis=3)
    return y


if __name__ == "__main__":
    key = jax.random.PRNGKey(0)

    # Primary test: module-sized f32 input.
    N, C, H, W = 2, 4, 16, 16
    SCALE = 2
    x = jax.random.normal(key, (N, C, H, W), dtype=jnp.float32)
    out = jax.block_until_ready(upsample_nearest(x, SCALE))
    ref = _reference_upsample(x, SCALE)
    assert out.shape == (N, C, H * SCALE, W * SCALE), out.shape
    assert out.dtype == x.dtype
    assert bool(jnp.allclose(out, ref)), "Pallas upsample mismatch vs reference (f32)"

    # Secondary test: bf16, non-128-multiple width (exercises the ragged tail chunk), scale=3.
    x2 = jax.random.normal(jax.random.PRNGKey(0), (1, 2, 4, 160), dtype=jnp.bfloat16)
    out2 = jax.block_until_ready(upsample_nearest(x2, 3))
    ref2 = _reference_upsample(x2, 3)
    assert out2.shape == (1, 2, 12, 480), out2.shape
    assert bool(jnp.allclose(out2.astype(jnp.float32), ref2.astype(jnp.float32))), \
        "Pallas upsample mismatch vs reference (bf16 tail)"

    print("KERNEL_OK")
</pallas_src>

<mosaic_0001>
module attributes {stable_mosaic.version = 11 : i64} {
  func.func @_upsample_nearest_kernel(%arg0: i32, %arg1: memref<64x16xf32, #tpu.memory_space<vmem>>, %arg2: memref<16x32xf32, #tpu.memory_space<vmem>>, %arg3: memref<64x64xf32, #tpu.memory_space<vmem>>) attributes {dimension_semantics = [#tpu.dimension_semantics<parallel>], iteration_bounds = array<i64: 2>, scalar_prefetch = 0 : i64, scratch_operands = 0 : i64, tpu.core_type = #tpu.core_type<tc>, window_params = [{transform_indices = @transform_0, window_bounds = array<i64: 64, 16>}, {pipeline_mode = #tpu.pipeline_mode<synchronous>, transform_indices = @transform_1, window_bounds = array<i64: 16, 32>}, {transform_indices = @transform_2, window_bounds = array<i64: 64, 64>}]} {
    %c0 = arith.constant 0 : index
    %c0_0 = arith.constant 0 : index
    %0 = vector.load %arg2[%c0, %c0_0] : memref<16x32xf32, #tpu.memory_space<vmem>>, vector<16x32xf32>
    %c0_1 = arith.constant 0 : index
    %c0_2 = arith.constant 0 : index
    %1 = vector.load %arg1[%c0_1, %c0_2] : memref<64x16xf32, #tpu.memory_space<vmem>>, vector<64x16xf32>
    %cst = arith.constant dense<0.000000e+00> : vector<64x32xf32>
    %2 = tpu.matmul %1, %0, %cst {dimension_numbers = #tpu.dot_dimension_numbers<[1], [0], [0], [1], [0, 0, 1, 1], [], []>, precision = #tpu.contract_precision<fp32>} : vector<64x16xf32>, vector<16x32xf32>, vector<64x32xf32> -> vector<64x32xf32>
    %c0_3 = arith.constant 0 : index
    %c0_4 = arith.constant 0 : index
    %3 = vector.load %arg3[%c0_3, %c0_4] : memref<64x64xf32, #tpu.memory_space<vmem>>, vector<64x32xf32>
    tpu.vector_store %arg3[%c0_3, %c0_4], %2 {strides = array<i32>} : memref<64x64xf32, #tpu.memory_space<vmem>>, vector<64x32xf32>,
    %c0_5 = arith.constant 0 : index
    %c32 = arith.constant 32 : index
    %4 = vector.load %arg3[%c0_5, %c32] : memref<64x64xf32, #tpu.memory_space<vmem>>, vector<64x32xf32>
    tpu.vector_store %arg3[%c0_5, %c32], %2 {strides = array<i32>} : memref<64x64xf32, #tpu.memory_space<vmem>>, vector<64x32xf32>,
    return
  }
  func.func @transform_0(%arg0: i32) -> (i32, i32) {
    %c0_i32 = arith.constant 0 : i32
    %c0_i32_0 = arith.constant 0 : i32
    return %arg0, %c0_i32 : i32, i32
  }
  func.func @transform_1(%arg0: i32) -> (i32, i32) {
    %c0_i32 = arith.constant 0 : i32
    %c0_i32_0 = arith.constant 0 : i32
    %c0_i32_1 = arith.constant 0 : i32
    return %c0_i32, %c0_i32_0 : i32, i32
  }
  func.func @transform_2(%arg0: i32) -> (i32, i32) {
    %c0_i32 = arith.constant 0 : i32
    %c0_i32_0 = arith.constant 0 : i32
    return %arg0, %c0_i32 : i32, i32
  }
}

</mosaic_0001>

<llo_original>
// kernel: tpu_custom_call.1
$region0: #{tpu_custom_call.1}
  #allocation0 [shape = 'u32[]', space=smem, size = 0x4, offset = 0x4, fixed_abs, tag = 'smem constant byte address 0x4 - core index']
  #allocation1 [shape = 'u32[144,128]{1,0:T(1,128)}', space=vmem, size = 0x12000, scoped, tag = 'internal scratch']
  %s0 = inlined_call_operand.vmem [shape: f32[128,16], index: 0, kind: input, shape index: {}]
  %s1 = inlined_call_operand.vmem [shape: f32[16,32], index: 1, kind: input, shape index: {}]
  %s2 = inlined_call_operand.vmem [shape: f32[128,64], index: 2, kind: output, shape index: {}]
  %s3 = sld [smem:[#allocation0]]
  $region41: #{tpu_custom_call.1} parent=0
    _
  %s5 = ssub.s32 1, %s3
  %s6 = scalar_select 0, %s5, %s3
  loop: start=0, step=1, limit=4
  $region2: #{tpu_custom_call.1} parent=0 // loop_pre_header
    _
  $region3: #{tpu_custom_call.1} parent=0 // loop_header
    %s8 = sphi 0, %s12
    %p9 = scmp.ge.s32.totalorder %s8, 4
    %s18 = sphi 0, %s20
    %s21 = sphi 0, %s18
    %s22 = sphi 0, %s21
    %s38 = sphi 0, %s22
    %s42 = sphi 0, %s42
    %s44 = sphi 0, %s42
    %s45 = sphi 0, %s44
    %s59 = sphi 0, %s45
    %s65 = sphi 0, %s67
    %s68 = sphi 0, %s65
    %s69 = sphi 0, %s68
    %s85 = sphi 0, %s69
  $region4: #{tpu_custom_call.1} parent=0 // loop_header_branch
    %11 = sbr.rel (%p9) target = $region8
  $region5: #{tpu_custom_call.1} parent=0 // loop_body
    %s13 = ssub.s32 %s8, 1
    %s14 = ssub.s32 %s8, 2
    %s15 = sadd.s32 %s8, 1
    %s16 = ssub.s32 %s8, %s15
    %p17 = scmp.eq.s32.totalorder %s16, 0
    %s19 = sadd.s32 %s18, 1
    %s20 = scalar_select %p17, %s18, %s19
    %p23 = pneg %p17
    %p24 = scmp.eq.s32.totalorder %s8, 1
    %p25 = por %p23, %p24
    %p26 = scmp.ne.s32.totalorder %s18, %s21
    %p27 = scmp.eq.s32.totalorder %s8, 0
    %p28 = por %p26, %p27
    %p29 = scmp.ne.s32.totalorder %s18, %s21
    %p30 = scmp.eq.s32.totalorder %s13, 1
    %p31 = por %p29, %p30
    %p32 = scmp.ne.s32.totalorder %s21, %s22
    %p33 = scmp.eq.s32.totalorder %s13, 0
    %p34 = por %p32, %p33
    %p35 = scmp.ne.s32.totalorder %s21, %s22
    %p36 = scmp.eq.s32.totalorder %s14, 1
    %p37 = por %p35, %p36
    %p39 = scmp.ne.s32.totalorder %s22, %s38
    %p40 = scmp.eq.s32.totalorder %s14, 0
    %p41 = por %p39, %p40
    %s43 = sadd.s32 %s42, 1
    %p46 = scmp.eq.s32.totalorder %s8, 1
    %p47 = scmp.ne.s32.totalorder %s42, %s44
    %p48 = scmp.eq.s32.totalorder %s8, 0
    %p49 = por %p47, %p48
    %p50 = scmp.ne.s32.totalorder %s42, %s44
    %p51 = scmp.eq.s32.totalorder %s13, 1
    %p52 = por %p50, %p51
    %p53 = scmp.ne.s32.totalorder %s44, %s45
    %p54 = scmp.eq.s32.totalorder %s13, 0
    %p55 = por %p53, %p54
    %p56 = scmp.ne.s32.totalorder %s44, %s45
    %p57 = scmp.eq.s32.totalorder %s14, 1
    %p58 = por %p56, %p57
    %p60 = scmp.ne.s32.totalorder %s45, %s59
    %p61 = scmp.eq.s32.totalorder %s14, 0
    %p62 = por %p60, %p61
    %s63 = ssub.s32 %s8, %s15
    %p64 = scmp.eq.s32.totalorder %s63, 0
    %s66 = sadd.s32 %s65, 1
    %s67 = scalar_select %p64, %s65, %s66
    %p70 = pneg %p64
    %p71 = scmp.eq.s32.totalorder %s8, 1
    %p72 = por %p70, %p71
    %p73 = scmp.ne.s32.totalorder %s65, %s68
    %p74 = scmp.eq.s32.totalorder %s8, 0
    %p75 = por %p73, %p74
    %p76 = scmp.ne.s32.totalorder %s65, %s68
    %p77 = scmp.eq.s32.totalorder %s13, 1
    %p78 = por %p76, %p77
    %p79 = scmp.ne.s32.totalorder %s68, %s69
    %p80 = scmp.eq.s32.totalorder %s13, 0
    %p81 = por %p79, %p80
    %p82 = scmp.ne.s32.totalorder %s68, %s69
    %p83 = scmp.eq.s32.totalorder %s14, 1
    %p84 = por %p82, %p83
    %p86 = scmp.ne.s32.totalorder %s69, %s85
    %p87 = scmp.eq.s32.totalorder %s14, 0
    %p88 = por %p86, %p87
    %p89 = scmp.le.s32.totalorder 1, %s8
    %p90 = scmp.lt.s32.totalorder %s8, 3
    %p91 = pnand %p89, %p90
    %p92 = pneg %p91
    // Predicated region
    $region9: #{tpu_custom_call.1} parent=5 // pred_check
      _
    $region10: #{tpu_custom_call.1} parent=5 // pred_check_branch
      %94 = sbr.rel (%p91) target = $region12
    $region11: #{tpu_custom_call.1} parent=5 // pred_region
      %s95 = ssub.s32 %s8, 1
      // Predicated region
      $region13: #{tpu_custom_call.1} parent=11 // pred_check
        %p96 = pneg %p55
      $region14: #{tpu_custom_call.1} parent=11 // pred_check_branch
        %98 = sbr.rel (%p96) target = $region16
      $region15: #{tpu_custom_call.1} parent=11 // pred_region
        _
      $region16: #{tpu_custom_call.1} parent=11 // pred_fallthru
        _
    $region12: #{tpu_custom_call.1} parent=5 // pred_fallthru
      _
    %p99 = scmp.lt.s32.totalorder %s8, 2
    // Predicated region
    $region17: #{tpu_custom_call.1} parent=5 // pred_check
      %p100 = pneg %p99
    $region18: #{tpu_custom_call.1} parent=5 // pred_check_branch
      %102 = sbr.rel (%p100) target = $region20
    $region19: #{tpu_custom_call.1} parent=5 // pred_region
      // Predicated region
      $region21: #{tpu_custom_call.1} parent=19 // pred_check
        %p103 = pneg %p28
      $region22: #{tpu_custom_call.1} parent=19 // pred_check_branch
        %105 = sbr.rel (%p103) target = $region24
      $region23: #{tpu_custom_call.1} parent=19 // pred_region
        %s106 = smul.u32 8, %s8
        %p107 = scmp.lt.s32.totalorder %s106, 15
        %s108 = scalar_select %p107, %s106, 15
        %s109 = smul.addr %s108, 8
        %s110 = scalar_lea.vmem %s0, %s109
        %s111 = smul.u32 8, %s8
      $region24: #{tpu_custom_call.1} parent=19 // pred_fallthru
        _
    $region20: #{tpu_custom_call.1} parent=5 // pred_fallthru
      _
    %p112 = scmp.le.s32.totalorder 1, %s8
    %p113 = scmp.lt.s32.totalorder %s8, 3
    %p114 = pnand %p112, %p113
    %p115 = pneg %p114
    // Predicated region
    $region25: #{tpu_custom_call.1} parent=5 // pred_check
      _
    $region26: #{tpu_custom_call.1} parent=5 // pred_check_branch
      %117 = sbr.rel (%p114) target = $region28
    $region27: #{tpu_custom_call.1} parent=5 // pred_region
      %s118 = ssub.s32 %s8, 1
      %s119 = smul.u32 8, %s13
      %p120 = scmp.lt.s32.totalorder %s119, 15
      %s121 = scalar_select %p120, %s119, 15
      %s122 = smul.addr %s121, 8
      %s123 = scalar_lea.vmem %s0, %s122
      %p124 = pneg %p34
      %p125 = pneg %p31
      %p126 = pneg %p55
      %p127 = pneg %p52
      %p128 = pneg %p81
      %p129 = pneg %p78
      %s130 = smul.u32 8, %s13
      %p131 = scmp.lt.s32.totalorder %s130, 15
      %s132 = scalar_select %p131, %s130, 15
      %s133 = smul.addr %s132, 8
      %s134 = scalar_lea.vmem %s2, %s133
      %s135 = smul.u32 8, %s13
      %p136 = scmp.lt.s32.totalorder %s135, 15
      %s137 = scalar_select %p136, %s135, 15
      %s138 = smul.addr %s137, 8
      %s139 = scalar_lea.vmem %s0, %s138
      %s140 = smul.u32 8, %s13
      %s141 = smul.u32 8, %s13
      %p142 = scmp.lt.s32.totalorder %s141, 15
      %s143 = scalar_select %p142, %s141, 15
      %s144 = smul.addr %s143, 8
      %s145 = scalar_lea.vmem %s2, %s144
      %s146 = smul.u32 8, %s13
      %v147 = vld [vmem:[%s1] sm:$0xff]
      %v148 = vld [vmem:[%s1 + $0x8] sm:$0xff]
      %v149 = vld [vmem:[%s139] sm:$0xff]
      %v150 = vld [vmem:[%s139 + $0x8] sm:$0xff]
      %v151 = vld [vmem:[%s139 + $0x10] sm:$0xff]
      %v152 = vld [vmem:[%s139 + $0x18] sm:$0xff]
      %v153 = vld [vmem:[%s139 + $0x20] sm:$0xff]
      %v154 = vld [vmem:[%s139 + $0x28] sm:$0xff]
      %v155 = vld [vmem:[%s139 + $0x30] sm:$0xff]
      %v156 = vld [vmem:[%s139 + $0x38] sm:$0xff]
      %vm157 = vcmask 130048
      %v159 = vsel %vm157, %v149, 0
      %v162 = vsel %vm157, %v150, 0
      %v165 = vsel %vm157, %v151, 0
      %v168 = vsel %vm157, %v152, 0
      %v171 = vsel %vm157, %v153, 0
      %v174 = vsel %vm157, %v154, 0
      %v177 = vsel %vm157, %v155, 0
      %v180 = vsel %vm157, %v156, 0
      %182 = vmatprep.subr.mxu0 0.0
      %183 = vmatpush1.msra.mxu0 0.0
      %184 = vmatprep.subr.mxu0 0.0
      %185 = vmatpush1.msra.mxu0 0.0
      %186 = vmatprep.subr.mxu0 0.0
      %187 = vmatpush1.msra.mxu0 0.0
      %188 = vmatprep.subr.mxu0 0.0
      %189 = vmatpush1.msra.mxu0 0.0
      %190 = vmatprep.subr.mxu0 0.0
      %191 = vmatpush1.msra.mxu0 0.0
      %192 = vmatprep.subr.mxu0 0.0
      %193 = vmatpush1.msra.mxu0 0.0
      %194 = vmatprep.subr.mxu0 0.0
      %195 = vmatpush1.msra.mxu0 0.0
      %196 = vmatprep.subr.mxu0 0.0
      %197 = vmatpush1.msra.mxu0 0.0
      %198 = vmatprep.subr.mxu0 0.0
      %199 = vmatpush1.msra.mxu0 0.0
      %200 = vmatprep.subr.mxu0 0.0
      %201 = vmatpush1.msra.mxu0 0.0
      %202 = vmatprep.subr.mxu0 0.0
      %203 = vmatpush1.msra.mxu0 0.0
      %204 = vmatprep.subr.mxu0 0.0
      %205 = vmatpush1.msra.mxu0 0.0
      %206 = vmatprep.subr.mxu0 0.0
      %207 = vmatpush1.msra.mxu0 0.0
      %208 = vmatprep.subr.mxu0 0.0
      %209 = vmatpush1.msra.mxu0 0.0
      %210 = vmatprep.subr.mxu0 0.0
      %v211 = vand.u32 %v148, 4294901760
      %212 = vmatpush1.msra.mxu0 %v211
      %213 = vmatprep.subr.mxu0 0.0
      %v214 = vand.u32 %v147, 4294901760
      %215 = vmatpush1.msra.mxu0 %v214
      %216 = vmatprep.subr.mxu0 0.0
      %217 = vmatpush2.msra.mxu0 0.0
      %218 = vmatprep.subr.mxu0 0.0
      %219 = vmatpush2.msra.mxu0 0.0
      %220 = vmatprep.subr.mxu0 0.0
      %221 = vmatpush2.msra.mxu0 0.0
      %222 = vmatprep.subr.mxu0 0.0
      %223 = vmatpush2.msra.mxu0 0.0
      %224 = vmatprep.subr.mxu0 0.0
      %225 = vmatpush2.msra.mxu0 0.0
      %226 = vmatprep.subr.mxu0 0.0
      %227 = vmatpush2.msra.mxu0 0.0
      %228 = vmatprep.subr.mxu0 0.0
      %229 = vmatpush2.msra.mxu0 0.0
      %230 = vmatprep.subr.mxu0 0.0
      %231 = vmatpush2.msra.mxu0 0.0
      %232 = vmatprep.subr.mxu0 0.0
      %233 = vmatpush2.msra.mxu0 0.0
      %234 = vmatprep.subr.mxu0 0.0
      %235 = vmatpush2.msra.mxu0 0.0
      %236 = vmatprep.subr.mxu0 0.0
      %237 = vmatpush2.msra.mxu0 0.0
      %238 = vmatprep.subr.mxu0 0.0
      %239 = vmatpush2.msra.mxu0 0.0
      %240 = vmatprep.subr.mxu0 0.0
      %241 = vmatpush2.msra.mxu0 0.0
      %242 = vmatprep.subr.mxu0 0.0
      %243 = vmatpush2.msra.mxu0 0.0
      %244 = vmatprep.subr.mxu0 0.0
      %245 = vmatpush2.msra.mxu0 0.0
      %246 = vmatprep.subr.mxu0 0.0
      %247 = vmatpush2.msra.mxu0 0.0
      %248 = vmatprep.mubr.f32.mxu0 0.0
      %v249 = vand.u32 %v159, 4294901760
      %v250 = vsub.f32 %v159, %v249
      %v251 = vand.u32 %v250, 4294901760
      %v252 = vsub.f32 %v250, %v251
      %v253 = vand.u32 %v252, 4294901760
      %254 = vmatmul.mubr.f32.gmra.mxu0 %v253
      %v255 = vpop.f32.mrf.mxu0
      %v256 = vadd.f32 0.0, %v255
      %v257 = vpop.f32.mrf.mxu0
      %258 = vmatprep.mubr.f32.mxu0 0.0
      %v259 = vand.u32 %v162, 4294901760
      %v260 = vsub.f32 %v162, %v259
      %v261 = vand.u32 %v260, 4294901760
      %v262 = vsub.f32 %v260, %v261
      %v263 = vand.u32 %v262, 4294901760
      %264 = vmatmul.mubr.f32.gmra.mxu0 %v263
      %v265 = vpop.f32.mrf.mxu0
      %v266 = vadd.f32 0.0, %v265
      %v267 = vpop.f32.mrf.mxu0
      %268 = vmatprep.mubr.f32.mxu0 0.0
      %v269 = vand.u32 %v165, 4294901760
      %v270 = vsub.f32 %v165, %v269
      %v271 = vand.u32 %v270, 4294901760
      %v272 = vsub.f32 %v270, %v271
      %v273 = vand.u32 %v272, 4294901760
      %274 = vmatmul.mubr.f32.gmra.mxu0 %v273
      %v275 = vpop.f32.mrf.mxu0
      %v276 = vadd.f32 0.0, %v275
      %v277 = vpop.f32.mrf.mxu0
      %278 = vmatprep.mubr.f32.mxu0 0.0
      %v279 = vand.u32 %v168, 4294901760
      %v280 = vsub.f32 %v168, %v279
      %v281 = vand.u32 %v280, 4294901760
      %v282 = vsub.f32 %v280, %v281
      %v283 = vand.u32 %v282, 4294901760
      %284 = vmatmul.mubr.f32.gmra.mxu0 %v283
      %v285 = vpop.f32.mrf.mxu0
      %v286 = vadd.f32 0.0, %v285
      %v287 = vpop.f32.mrf.mxu0
      %288 = vmatprep.mubr.f32.mxu0 0.0
      %v289 = vand.u32 %v171, 4294901760
      %v290 = vsub.f32 %v171, %v289
      %v291 = vand.u32 %v290, 4294901760
      %v292 = vsub.f32 %v290, %v291
      %v293 = vand.u32 %v292, 4294901760
      %294 = vmatmul.mubr.f32.gmra.mxu0 %v293
      %v295 = vpop.f32.mrf.mxu0
      %v296 = vadd.f32 0.0, %v295
      %v297 = vpop.f32.mrf.mxu0
      %298 = vmatprep.mubr.f32.mxu0 0.0
      %v299 = vand.u32 %v174, 4294901760
      %v300 = vsub.f32 %v174, %v299
      %v301 = vand.u32 %v300, 4294901760
      %v302 = vsub.f32 %v300, %v301
      %v303 = vand.u32 %v302, 4294901760
      %304 = vmatmul.mubr.f32.gmra.mxu0 %v303
      %v305 = vpop.f32.mrf.mxu0
      %v306 = vadd.f32 0.0, %v305
      %v307 = vpop.f32.mrf.mxu0
      %308 = vmatprep.mubr.f32.mxu0 0.0
      %v309 = vand.u32 %v177, 4294901760
      %v310 = vsub.f32 %v177, %v309
      %v311 = vand.u32 %v310, 4294901760
      %v312 = vsub.f32 %v310, %v311
      %v313 = vand.u32 %v312, 4294901760
      %314 = vmatmul.mubr.f32.gmra.mxu0 %v313
      %v315 = vpop.f32.mrf.mxu0
      %v316 = vadd.f32 0.0, %v315
      %v317 = vpop.f32.mrf.mxu0
      %318 = vmatprep.mubr.f32.mxu0 0.0
      %v319 = vand.u32 %v180, 4294901760
      %v320 = vsub.f32 %v180, %v319
      %v321 = vand.u32 %v320, 4294901760
      %v322 = vsub.f32 %v320, %v321
      %v323 = vand.u32 %v322, 4294901760
      %324 = vmatmul.mubr.f32.gmra.mxu0 %v323
      %v325 = vpop.f32.mrf.mxu0
      %v326 = vadd.f32 0.0, %v325
      %v327 = vpop.f32.mrf.mxu0
      %328 = vdwg.mxu0
      %329 = vmatprep.subr.mxu0 0.0
      %330 = vmatpush1.msra.mxu0 0.0
      %331 = vmatprep.subr.mxu0 0.0
      %332 = vmatpush1.msra.mxu0 0.0
      %333 = vmatprep.subr.mxu0 0.0
      %334 = vmatpush1.msra.mxu0 0.0
      %335 = vmatprep.subr.mxu0 0.0
      %336 = vmatpush1.msra.mxu0 0.0
      %337 = vmatprep.subr.mxu0 0.0
      %338 = vmatpush1.msra.mxu0 0.0
      %339 = vmatprep.subr.mxu0 0.0
      %340 = vmatpush1.msra.mxu0 0.0
      %341 = vmatprep.subr.mxu0 0.0
      %342 = vmatpush1.msra.mxu0 0.0
      %343 = vmatprep.subr.mxu0 0.0
      %344 = vmatpush1.msra.mxu0 0.0
      %345 = vmatprep.subr.mxu0 0.0
      %346 = vmatpush1.msra.mxu0 0.0
      %347 = vmatprep.subr.mxu0 0.0
      %348 = vmatpush1.msra.mxu0 0.0
      %349 = vmatprep.subr.mxu0 0.0
      %350 = vmatpush1.msra.mxu0 0.0
      %351 = vmatprep.subr.mxu0 0.0
      %352 = vmatpush1.msra.mxu0 0.0
      %353 = vmatprep.subr.mxu0 0.0
      %354 = vmatpush1.msra.mxu0 0.0
      %355 = vmatprep.subr.mxu0 0.0
      %356 = vmatpush1.msra.mxu0 0.0
      %357 = vmatprep.subr.mxu0 0.0
      %v358 = vand.u32 %v148, 4294901760
      %v359 = vsub.f32 %v148, %v358
      %v360 = vand.u32 %v359, 4294901760
      %v361 = vsub.f32 %v359, %v360
      %v362 = vand.u32 %v361, 4294901760
      %363 = vmatpush1.msra.mxu0 %v362
      %364 = vmatprep.subr.mxu0 0.0
      %v365 = vand.u32 %v147, 4294901760
      %v366 = vsub.f32 %v147, %v365
      %v367 = vand.u32 %v366, 4294901760
      %v368 = vsub.f32 %v366, %v367
      %v369 = vand.u32 %v368, 4294901760
      %370 = vmatpush1.msra.mxu0 %v369
      %371 = vmatprep.subr.mxu0 0.0
      %372 = vmatpush2.msra.mxu0 0.0
      %373 = vmatprep.subr.mxu0 0.0
      %374 = vmatpush2.msra.mxu0 0.0
      %375 = vmatprep.subr.mxu0 0.0
      %376 = vmatpush2.msra.mxu0 0.0
      %377 = vmatprep.subr.mxu0 0.0
      %378 = vmatpush2.msra.mxu0 0.0
      %379 = vmatprep.subr.mxu0 0.0
      %380 = vmatpush2.msra.mxu0 0.0
      %381 = vmatprep.subr.mxu0 0.0
      %382 = vmatpush2.msra.mxu0 0.0
      %383 = vmatprep.subr.mxu0 0.0
      %384 = vmatpush2.msra.mxu0 0.0
      %385 = vmatprep.subr.mxu0 0.0
      %386 = vmatpush2.msra.mxu0 0.0
      %387 = vmatprep.subr.mxu0 0.0
      %388 = vmatpush2.msra.mxu0 0.0
      %389 = vmatprep.subr.mxu0 0.0
      %390 = vmatpush2.msra.mxu0 0.0
      %391 = vmatprep.subr.mxu0 0.0
      %392 = vmatpush2.msra.mxu0 0.0
      %393 = vmatprep.subr.mxu0 0.0
      %394 = vmatpush2.msra.mxu0 0.0
      %395 = vmatprep.subr.mxu0 0.0
      %396 = vmatpush2.msra.mxu0 0.0
      %397 = vmatprep.subr.mxu0 0.0
      %398 = vmatpush2.msra.mxu0 0.0
      %399 = vmatprep.subr.mxu0 0.0
      %400 = vmatpush2.msra.mxu0 0.0
      %401 = vmatprep.subr.mxu0 0.0
      %402 = vmatpush2.msra.mxu0 0.0
      %403 = vmatprep.mubr.f32.mxu0 0.0
      %v404 = vand.u32 %v159, 4294901760
      %405 = vmatmul.mubr.f32.gmra.mxu0 %v404
      %v406 = vpop.f32.mrf.mxu0
      %v407 = vadd.f32 %v256, %v406
      %v408 = vpop.f32.mrf.mxu0
      %409 = vmatprep.mubr.f32.mxu0 0.0
      %v410 = vand.u32 %v162, 4294901760
      %411 = vmatmul.mubr.f32.gmra.mxu0 %v410
      %v412 = vpop.f32.mrf.mxu0
      %v413 = vadd.f32 %v266, %v412
      %v414 = vpop.f32.mrf.mxu0
      %415 = vmatprep.mubr.f32.mxu0 0.0
      %v416 = vand.u32 %v165, 4294901760
      %417 = vmatmul.mubr.f32.gmra.mxu0 %v416
      %v418 = vpop.f32.mrf.mxu0
      %v419 = vadd.f32 %v276, %v418
      %v420 = vpop.f32.mrf.mxu0
      %421 = vmatprep.mubr.f32.mxu0 0.0
      %v422 = vand.u32 %v168, 4294901760
      %423 = vmatmul.mubr.f32.gmra.mxu0 %v422
      %v424 = vpop.f32.mrf.mxu0
      %v425 = vadd.f32 %v286, %v424
      %v426 = vpop.f32.mrf.mxu0
      %427 = vmatprep.mubr.f32.mxu0 0.0
      %v428 = vand.u32 %v171, 4294901760
      %429 = vmatmul.mubr.f32.gmra.mxu0 %v428
      %v430 = vpop.f32.mrf.mxu0
      %v431 = vadd.f32 %v296, %v430
      %v432 = vpop.f32.mrf.mxu0
      %433 = vmatprep.mubr.f32.mxu0 0.0
      %v434 = vand.u32 %v174, 4294901760
      %435 = vmatmul.mubr.f32.gmra.mxu0 %v434
      %v436 = vpop.f32.mrf.mxu0
      %v437 = vadd.f32 %v306, %v436
      %v438 = vpop.f32.mrf.mxu0
      %439 = vmatprep.mubr.f32.mxu0 0.0
      %v440 = vand.u32 %v177, 4294901760
      %441 = vmatmul.mubr.f32.gmra.mxu0 %v440
      %v442 = vpop.f32.mrf.mxu0
      %v443 = vadd.f32 %v316, %v442
      %v444 = vpop.f32.mrf.mxu0
      %445 = vmatprep.mubr.f32.mxu0 0.0
      %v446 = vand.u32 %v180, 4294901760
      %447 = vmatmul.mubr.f32.gmra.mxu0 %v446
      %v448 = vpop.f32.mrf.mxu0
      %v449 = vadd.f32 %v326, %v448
      %v450 = vpop.f32.mrf.mxu0
      %451 = vdwg.mxu0
      %452 = vmatprep.subr.mxu0 0.0
      %453 = vmatpush1.msra.mxu0 0.0
      %454 = vmatprep.subr.mxu0 0.0
      %455 = vmatpush1.msra.mxu0 0.0
      %456 = vmatprep.subr.mxu0 0.0
      %457 = vmatpush1.msra.mxu0 0.0
      %458 = vmatprep.subr.mxu0 0.0
      %459 = vmatpush1.msra.mxu0 0.0
      %460 = vmatprep.subr.mxu0 0.0
      %461 = vmatpush1.msra.mxu0 0.0
      %462 = vmatprep.subr.mxu0 0.0
      %463 = vmatpush1.msra.mxu0 0.0
      %464 = vmatprep.subr.mxu0 0.0
      %465 = vmatpush1.msra.mxu0 0.0
      %466 = vmatprep.subr.mxu0 0.0
      %467 = vmatpush1.msra.mxu0 0.0
      %468 = vmatprep.subr.mxu0 0.0
      %469 = vmatpush1.msra.mxu0 0.0
      %470 = vmatprep.subr.mxu0 0.0
      %471 = vmatpush1.msra.mxu0 0.0
      %472 = vmatprep.subr.mxu0 0.0
      %473 = vmatpush1.msra.mxu0 0.0
      %474 = vmatprep.subr.mxu0 0.0
      %475 = vmatpush1.msra.mxu0 0.0
      %476 = vmatprep.subr.mxu0 0.0
      %477 = vmatpush1.msra.mxu0 0.0
      %478 = vmatprep.subr.mxu0 0.0
      %479 = vmatpush1.msra.mxu0 0.0
      %480 = vmatprep.subr.mxu0 0.0
      %v481 = vand.u32 %v148, 4294901760
      %v482 = vsub.f32 %v148, %v481
      %483 = vmatpush1.msra.mxu0 %v482
      %484 = vmatprep.subr.mxu0 0.0
      %v485 = vand.u32 %v147, 4294901760
      %v486 = vsub.f32 %v147, %v485
      %487 = vmatpush1.msra.mxu0 %v486
      %488 = vmatprep.subr.mxu0 0.0
      %489 = vmatpush2.msra.mxu0 0.0
      %490 = vmatprep.subr.mxu0 0.0
      %491 = vmatpush2.msra.mxu0 0.0
      %492 = vmatprep.subr.mxu0 0.0
      %493 = vmatpush2.msra.mxu0 0.0
      %494 = vmatprep.subr.mxu0 0.0
      %495 = vmatpush2.msra.mxu0 0.0
      %496 = vmatprep.subr.mxu0 0.0
      %497 = vmatpush2.msra.mxu0 0.0
      %498 = vmatprep.subr.mxu0 0.0
      %499 = vmatpush2.msra.mxu0 0.0
      %500 = vmatprep.subr.mxu0 0.0
      %501 = vmatpush2.msra.mxu0 0.0
      %502 = vmatprep.subr.mxu0 0.0
      %503 = vmatpush2.msra.mxu0 0.0
      %504 = vmatprep.subr.mxu0 0.0
      %505 = vmatpush2.msra.mxu0 0.0
      %506 = vmatprep.subr.mxu0 0.0
      %507 = vmatpush2.msra.mxu0 0.0
      %508 = vmatprep.subr.mxu0 0.0
      %509 = vmatpush2.msra.mxu0 0.0
      %510 = vmatprep.subr.mxu0 0.0
      %511 = vmatpush2.msra.mxu0 0.0
      %512 = vmatprep.subr.mxu0 0.0
      %513 = vmatpush2.msra.mxu0 0.0
      %514 = vmatprep.subr.mxu0 0.0
      %515 = vmatpush2.msra.mxu0 0.0
      %516 = vmatprep.subr.mxu0 0.0
      %517 = vmatpush2.msra.mxu0 0.0
      %518 = vmatprep.subr.mxu0 0.0
      %519 = vmatpush2.msra.mxu0 0.0
      %520 = vmatprep.mubr.f32.mxu0 0.0
      %v521 = vand.u32 %v159, 4294901760
      %v522 = vsub.f32 %v159, %v521
      %523 = vmatmul.mubr.f32.gmra.mxu0 %v522
      %v524 = vpop.f32.mrf.mxu0
      %v525 = vadd.f32 %v407, %v524
      %v526 = vpop.f32.mrf.mxu0
      %527 = vmatprep.mubr.f32.mxu0 0.0
      %v528 = vand.u32 %v162, 4294901760
      %v529 = vsub.f32 %v162, %v528
      %530 = vmatmul.mubr.f32.gmra.mxu0 %v529
      %v531 = vpop.f32.mrf.mxu0
      %v532 = vadd.f32 %v413, %v531
      %v533 = vpop.f32.mrf.mxu0
      %534 = vmatprep.mubr.f32.mxu0 0.0
      %v535 = vand.u32 %v165, 4294901760
      %v536 = vsub.f32 %v165, %v535
      %537 = vmatmul.mubr.f32.gmra.mxu0 %v536
      %v538 = vpop.f32.mrf.mxu0
      %v539 = vadd.f32 %v419, %v538
      %v540 = vpop.f32.mrf.mxu0
      %541 = vmatprep.mubr.f32.mxu0 0.0
      %v542 = vand.u32 %v168, 4294901760
      %v543 = vsub.f32 %v168, %v542
      %544 = vmatmul.mubr.f32.gmra.mxu0 %v543
      %v545 = vpop.f32.mrf.mxu0
      %v546 = vadd.f32 %v425, %v545
      %v547 = vpop.f32.mrf.mxu0
      %548 = vmatprep.mubr.f32.mxu0 0.0
      %v549 = vand.u32 %v171, 4294901760
      %v550 = vsub.f32 %v171, %v549
      %551 = vmatmul.mubr.f32.gmra.mxu0 %v550
      %v552 = vpop.f32.mrf.mxu0
      %v553 = vadd.f32 %v431, %v552
      %v554 = vpop.f32.mrf.mxu0
      %555 = vmatprep.mubr.f32.mxu0 0.0
      %v556 = vand.u32 %v174, 4294901760
      %v557 = vsub.f32 %v174, %v556
      %558 = vmatmul.mubr.f32.gmra.mxu0 %v557
      %v559 = vpop.f32.mrf.mxu0
      %v560 = vadd.f32 %v437, %v559
      %v561 = vpop.f32.mrf.mxu0
      %562 = vmatprep.mubr.f32.mxu0 0.0
      %v563 = vand.u32 %v177, 4294901760
      %v564 = vsub.f32 %v177, %v563
      %565 = vmatmul.mubr.f32.gmra.mxu0 %v564
      %v566 = vpop.f32.mrf.mxu0
      %v567 = vadd.f32 %v443, %v566
      %v568 = vpop.f32.mrf.mxu0
      %569 = vmatprep.mubr.f32.mxu0 0.0
      %v570 = vand.u32 %v180, 4294901760
      %v571 = vsub.f32 %v180, %v570
      %572 = vmatmul.mubr.f32.gmra.mxu0 %v571
      %v573 = vpop.f32.mrf.mxu0
      %v574 = vadd.f32 %v449, %v573
      %v575 = vpop.f32.mrf.mxu0
      %576 = vdwg.mxu0
      %577 = vmatprep.subr.mxu0 0.0
      %578 = vmatpush1.msra.mxu0 0.0
      %579 = vmatprep.subr.mxu0 0.0
      %580 = vmatpush1.msra.mxu0 0.0
      %581 = vmatprep.subr.mxu0 0.0
      %582 = vmatpush1.msra.mxu0 0.0
      %583 = vmatprep.subr.mxu0 0.0
      %584 = vmatpush1.msra.mxu0 0.0
      %585 = vmatprep.subr.mxu0 0.0
      %586 = vmatpush1.msra.mxu0 0.0
      %587 = vmatprep.subr.mxu0 0.0
      %588 = vmatpush1.msra.mxu0 0.0
      %589 = vmatprep.subr.mxu0 0.0
      %590 = vmatpush1.msra.mxu0 0.0
      %591 = vmatprep.subr.mxu0 0.0
      %592 = vmatpush1.msra.mxu0 0.0
      %593 = vmatprep.subr.mxu0 0.0
      %594 = vmatpush1.msra.mxu0 0.0
      %595 = vmatprep.subr.mxu0 0.0
      %596 = vmatpush1.msra.mxu0 0.0
      %597 = vmatprep.subr.mxu0 0.0
      %598 = vmatpush1.msra.mxu0 0.0
      %599 = vmatprep.subr.mxu0 0.0
      %600 = vmatpush1.msra.mxu0 0.0
      %601 = vmatprep.subr.mxu0 0.0
      %602 = vmatpush1.msra.mxu0 0.0
      %603 = vmatprep.subr.mxu0 0.0
      %604 = vmatpush1.msra.mxu0 0.0
      %605 = vmatprep.subr.mxu0 0.0
      %v606 = vand.u32 %v148, 4294901760
      %607 = vmatpush1.msra.mxu0 %v606
      %608 = vmatprep.subr.mxu0 0.0
      %v609 = vand.u32 %v147, 4294901760
      %610 = vmatpush1.msra.mxu0 %v609
      %611 = vmatprep.subr.mxu0 0.0
      %612 = vmatpush2.msra.mxu0 0.0
      %613 = vmatprep.subr.mxu0 0.0
      %614 = vmatpush2.msra.mxu0 0.0
      %615 = vmatprep.subr.mxu0 0.0
      %616 = vmatpush2.msra.mxu0 0.0
      %617 = vmatprep.subr.mxu0 0.0
      %618 = vmatpush2.msra.mxu0 0.0
      %619 = vmatprep.subr.mxu0 0.0
      %620 = vmatpush2.msra.mxu0 0.0
      %621 = vmatprep.subr.mxu0 0.0
      %622 = vmatpush2.msra.mxu0 0.0
      %623 = vmatprep.subr.mxu0 0.0
      %624 = vmatpush2.msra.mxu0 0.0
      %625 = vmatprep.subr.mxu0 0.0
      %626 = vmatpush2.msra.mxu0 0.0
      %627 = vmatprep.subr.mxu0 0.0
      %628 = vmatpush2.msra.mxu0 0.0
      %629 = vmatprep.subr.mxu0 0.0
      %630 = vmatpush2.msra.mxu0 0.0
      %631 = vmatprep.subr.mxu0 0.0
      %632 = vmatpush2.msra.mxu0 0.0
      %633 = vmatprep.subr.mxu0 0.0
      %634 = vmatpush2.msra.mxu0 0.0
      %635 = vmatprep.subr.mxu0 0.0
      %636 = vmatpush2.msra.mxu0 0.0
      %637 = vmatprep.subr.mxu0 0.0
      %638 = vmatpush2.msra.mxu0 0.0
      %639 = vmatprep.subr.mxu0 0.0
      %640 = vmatpush2.msra.mxu0 0.0
      %641 = vmatprep.subr.mxu0 0.0
      %642 = vmatpush2.msra.mxu0 0.0
      %643 = vmatprep.mubr.f32.mxu0 0.0
      %v644 = vand.u32 %v159, 4294901760
      %v645 = vsub.f32 %v159, %v644
      %v646 = vand.u32 %v645, 4294901760
      %647 = vmatmul.mubr.f32.gmra.mxu0 %v646
      %v648 = vpop.f32.mrf.mxu0
      %v649 = vadd.f32 %v525, %v648
      %v650 = vpop.f32.mrf.mxu0
      %651 = vmatprep.mubr.f32.mxu0 0.0
      %v652 = vand.u32 %v162, 4294901760
      %v653 = vsub.f32 %v162, %v652
      %v654 = vand.u32 %v653, 4294901760
      %655 = vmatmul.mubr.f32.gmra.mxu0 %v654
      %v656 = vpop.f32.mrf.mxu0
      %v657 = vadd.f32 %v532, %v656
      %v658 = vpop.f32.mrf.mxu0
      %659 = vmatprep.mubr.f32.mxu0 0.0
      %v660 = vand.u32 %v165, 4294901760
      %v661 = vsub.f32 %v165, %v660
      %v662 = vand.u32 %v661, 4294901760
      %663 = vmatmul.mubr.f32.gmra.mxu0 %v662
      %v664 = vpop.f32.mrf.mxu0
      %v665 = vadd.f32 %v539, %v664
      %v666 = vpop.f32.mrf.mxu0
      %667 = vmatprep.mubr.f32.mxu0 0.0
      %v668 = vand.u32 %v168, 4294901760
      %v669 = vsub.f32 %v168, %v668
      %v670 = vand.u32 %v669, 4294901760
      %671 = vmatmul.mubr.f32.gmra.mxu0 %v670
      %v672 = vpop.f32.mrf.mxu0
      %v673 = vadd.f32 %v546, %v672
      %v674 = vpop.f32.mrf.mxu0
      %675 = vmatprep.mubr.f32.mxu0 0.0
      %v676 = vand.u32 %v171, 4294901760
      %v677 = vsub.f32 %v171, %v676
      %v678 = vand.u32 %v677, 4294901760
      %679 = vmatmul.mubr.f32.gmra.mxu0 %v678
      %v680 = vpop.f32.mrf.mxu0
      %v681 = vadd.f32 %v553, %v680
      %v682 = vpop.f32.mrf.mxu0
      %683 = vmatprep.mubr.f32.mxu0 0.0
      %v684 = vand.u32 %v174, 4294901760
      %v685 = vsub.f32 %v174, %v684
      %v686 = vand.u32 %v685, 4294901760
      %687 = vmatmul.mubr.f32.gmra.mxu0 %v686
      %v688 = vpop.f32.mrf.mxu0
      %v689 = vadd.f32 %v560, %v688
      %v690 = vpop.f32.mrf.mxu0
      %691 = vmatprep.mubr.f32.mxu0 0.0
      %v692 = vand.u32 %v177, 4294901760
      %v693 = vsub.f32 %v177, %v692
      %v694 = vand.u32 %v693, 4294901760
      %695 = vmatmul.mubr.f32.gmra.mxu0 %v694
      %v696 = vpop.f32.mrf.mxu0
      %v697 = vadd.f32 %v567, %v696
      %v698 = vpop.f32.mrf.mxu0
      %699 = vmatprep.mubr.f32.mxu0 0.0
      %v700 = vand.u32 %v180, 4294901760
      %v701 = vsub.f32 %v180, %v700
      %v702 = vand.u32 %v701, 4294901760
      %703 = vmatmul.mubr.f32.gmra.mxu0 %v702
      %v704 = vpop.f32.mrf.mxu0
      %v705 = vadd.f32 %v574, %v704
      %v706 = vpop.f32.mrf.mxu0
      %707 = vdwg.mxu0
      %708 = vmatprep.subr.mxu0 0.0
      %709 = vmatpush1.msra.mxu0 0.0
      %710 = vmatprep.subr.mxu0 0.0
      %711 = vmatpush1.msra.mxu0 0.0
      %712 = vmatprep.subr.mxu0 0.0
      %713 = vmatpush1.msra.mxu0 0.0
      %714 = vmatprep.subr.mxu0 0.0
      %715 = vmatpush1.msra.mxu0 0.0
      %716 = vmatprep.subr.mxu0 0.0
      %717 = vmatpush1.msra.mxu0 0.0
      %718 = vmatprep.subr.mxu0 0.0
      %719 = vmatpush1.msra.mxu0 0.0
      %720 = vmatprep.subr.mxu0 0.0
      %721 = vmatpush1.msra.mxu0 0.0
      %722 = vmatprep.subr.mxu0 0.0
      %723 = vmatpush1.msra.mxu0 0.0
      %724 = vmatprep.subr.mxu0 0.0
      %725 = vmatpush1.msra.mxu0 0.0
      %726 = vmatprep.subr.mxu0 0.0
      %727 = vmatpush1.msra.mxu0 0.0
      %728 = vmatprep.subr.mxu0 0.0
      %729 = vmatpush1.msra.mxu0 0.0
      %730 = vmatprep.subr.mxu0 0.0
      %731 = vmatpush1.msra.mxu0 0.0
      %732 = vmatprep.subr.mxu0 0.0
      %733 = vmatpush1.msra.mxu0 0.0
      %734 = vmatprep.subr.mxu0 0.0
      %735 = vmatpush1.msra.mxu0 0.0
      %736 = vmatprep.subr.mxu0 0.0
      %v737 = vand.u32 %v148, 4294901760
      %v738 = vsub.f32 %v148, %v737
      %v739 = vand.u32 %v738, 4294901760
      %740 = vmatpush1.msra.mxu0 %v739
      %741 = vmatprep.subr.mxu0 0.0
      %v742 = vand.u32 %v147, 4294901760
      %v743 = vsub.f32 %v147, %v742
      %v744 = vand.u32 %v743, 4294901760
      %745 = vmatpush1.msra.mxu0 %v744
      %746 = vmatprep.subr.mxu0 0.0
      %747 = vmatpush2.msra.mxu0 0.0
      %748 = vmatprep.subr.mxu0 0.0
      %749 = vmatpush2.msra.mxu0 0.0
      %750 = vmatprep.subr.mxu0 0.0
      %751 = vmatpush2.msra.mxu0 0.0
      %752 = vmatprep.subr.mxu0 0.0
      %753 = vmatpush2.msra.mxu0 0.0
      %754 = vmatprep.subr.mxu0 0.0
      %755 = vmatpush2.msra.mxu0 0.0
      %756 = vmatprep.subr.mxu0 0.0
      %757 = vmatpush2.msra.mxu0 0.0
      %758 = vmatprep.subr.mxu0 0.0
      %759 = vmatpush2.msra.mxu0 0.0
      %760 = vmatprep.subr.mxu0 0.0
      %761 = vmatpush2.msra.mxu0 0.0
      %762 = vmatprep.subr.mxu0 0.0
      %763 = vmatpush2.msra.mxu0 0.0
      %764 = vmatprep.subr.mxu0 0.0
      %765 = vmatpush2.msra.mxu0 0.0
      %766 = vmatprep.subr.mxu0 0.0
      %767 = vmatpush2.msra.mxu0 0.0
      %768 = vmatprep.subr.mxu0 0.0
      %769 = vmatpush2.msra.mxu0 0.0
      %770 = vmatprep.subr.mxu0 0.0
      %771 = vmatpush2.msra.mxu0 0.0
      %772 = vmatprep.subr.mxu0 0.0
      %773 = vmatpush2.msra.mxu0 0.0
      %774 = vmatprep.subr.mxu0 0.0
      %775 = vmatpush2.msra.mxu0 0.0
      %776 = vmatprep.subr.mxu0 0.0
      %777 = vmatpush2.msra.mxu0 0.0
      %778 = vmatprep.mubr.f32.mxu0 0.0
      %v779 = vand.u32 %v159, 4294901760
      %780 = vmatmul.mubr.f32.gmra.mxu0 %v779
      %v781 = vpop.f32.mrf.mxu0
      %v782 = vadd.f32 %v649, %v781
      %v783 = vpop.f32.mrf.mxu0
      %784 = vmatprep.mubr.f32.mxu0 0.0
      %v785 = vand.u32 %v162, 4294901760
      %786 = vmatmul.mubr.f32.gmra.mxu0 %v785
      %v787 = vpop.f32.mrf.mxu0
      %v788 = vadd.f32 %v657, %v787
      %v789 = vpop.f32.mrf.mxu0
      %790 = vmatprep.mubr.f32.mxu0 0.0
      %v791 = vand.u32 %v165, 4294901760
      %792 = vmatmul.mubr.f32.gmra.mxu0 %v791
      %v793 = vpop.f32.mrf.mxu0
      %v794 = vadd.f32 %v665, %v793
      %v795 = vpop.f32.mrf.mxu0
      %796 = vmatprep.mubr.f32.mxu0 0.0
      %v797 = vand.u32 %v168, 4294901760
      %798 = vmatmul.mubr.f32.gmra.mxu0 %v797
      %v799 = vpop.f32.mrf.mxu0
      %v800 = vadd.f32 %v673, %v799
      %v801 = vpop.f32.mrf.mxu0
      %802 = vmatprep.mubr.f32.mxu0 0.0
      %v803 = vand.u32 %v171, 4294901760
      %804 = vmatmul.mubr.f32.gmra.mxu0 %v803
      %v805 = vpop.f32.mrf.mxu0
      %v806 = vadd.f32 %v681, %v805
      %v807 = vpop.f32.mrf.mxu0
      %808 = vmatprep.mubr.f32.mxu0 0.0
      %v809 = vand.u32 %v174, 4294901760
      %810 = vmatmul.mubr.f32.gmra.mxu0 %v809
      %v811 = vpop.f32.mrf.mxu0
      %v812 = vadd.f32 %v689, %v811
      %v813 = vpop.f32.mrf.mxu0
      %814 = vmatprep.mubr.f32.mxu0 0.0
      %v815 = vand.u32 %v177, 4294901760
      %816 = vmatmul.mubr.f32.gmra.mxu0 %v815
      %v817 = vpop.f32.mrf.mxu0
      %v818 = vadd.f32 %v697, %v817
      %v819 = vpop.f32.mrf.mxu0
      %820 = vmatprep.mubr.f32.mxu0 0.0
      %v821 = vand.u32 %v180, 4294901760
      %822 = vmatmul.mubr.f32.gmra.mxu0 %v821
      %v823 = vpop.f32.mrf.mxu0
      %v824 = vadd.f32 %v705, %v823
      %v825 = vpop.f32.mrf.mxu0
      %826 = vdwg.mxu0
      %827 = vmatprep.subr.mxu0 0.0
      %828 = vmatpush1.msra.mxu0 0.0
      %829 = vmatprep.subr.mxu0 0.0
      %830 = vmatpush1.msra.mxu0 0.0
      %831 = vmatprep.subr.mxu0 0.0
      %832 = vmatpush1.msra.mxu0 0.0
      %833 = vmatprep.subr.mxu0 0.0
      %834 = vmatpush1.msra.mxu0 0.0
      %835 = vmatprep.subr.mxu0 0.0
      %836 = vmatpush1.msra.mxu0 0.0
      %837 = vmatprep.subr.mxu0 0.0
      %838 = vmatpush1.msra.mxu0 0.0
      %839 = vmatprep.subr.mxu0 0.0
      %840 = vmatpush1.msra.mxu0 0.0
      %841 = vmatprep.subr.mxu0 0.0
      %842 = vmatpush1.msra.mxu0 0.0
      %843 = vmatprep.subr.mxu0 0.0
      %844 = vmatpush1.msra.mxu0 0.0
      %845 = vmatprep.subr.mxu0 0.0
      %846 = vmatpush1.msra.mxu0 0.0
      %847 = vmatprep.subr.mxu0 0.0
      %848 = vmatpush1.msra.mxu0 0.0
      %849 = vmatprep.subr.mxu0 0.0
      %850 = vmatpush1.msra.mxu0 0.0
      %851 = vmatprep.subr.mxu0 0.0
      %852 = vmatpush1.msra.mxu0 0.0
      %853 = vmatprep.subr.mxu0 0.0
      %854 = vmatpush1.msra.mxu0 0.0
      %855 = vmatprep.subr.mxu0 0.0
      %v856 = vand.u32 %v148, 4294901760
      %857 = vmatpush1.msra.mxu0 %v856
      %858 = vmatprep.subr.mxu0 0.0
      %v859 = vand.u32 %v147, 4294901760
      %860 = vmatpush1.msra.mxu0 %v859
      %861 = vmatprep.subr.mxu0 0.0
      %862 = vmatpush2.msra.mxu0 0.0
      %863 = vmatprep.subr.mxu0 0.0
      %864 = vmatpush2.msra.mxu0 0.0
      %865 = vmatprep.subr.mxu0 0.0
      %866 = vmatpush2.msra.mxu0 0.0
      %867 = vmatprep.subr.mxu0 0.0
      %868 = vmatpush2.msra.mxu0 0.0
      %869 = vmatprep.subr.mxu0 0.0
      %870 = vmatpush2.msra.mxu0 0.0
      %871 = vmatprep.subr.mxu0 0.0
      %872 = vmatpush2.msra.mxu0 0.0
      %873 = vmatprep.subr.mxu0 0.0
      %874 = vmatpush2.msra.mxu0 0.0
      %875 = vmatprep.subr.mxu0 0.0
      %876 = vmatpush2.msra.mxu0 0.0
      %877 = vmatprep.subr.mxu0 0.0
      %878 = vmatpush2.msra.mxu0 0.0
      %879 = vmatprep.subr.mxu0 0.0
      %880 = vmatpush2.msra.mxu0 0.0
      %881 = vmatprep.subr.mxu0 0.0
      %882 = vmatpush2.msra.mxu0 0.0
      %883 = vmatprep.subr.mxu0 0.0
      %884 = vmatpush2.msra.mxu0 0.0
      %885 = vmatprep.subr.mxu0 0.0
      %886 = vmatpush2.msra.mxu0 0.0
      %887 = vmatprep.subr.mxu0 0.0
      %888 = vmatpush2.msra.mxu0 0.0
      %889 = vmatprep.subr.mxu0 0.0
      %890 = vmatpush2.msra.mxu0 0.0
      %891 = vmatprep.subr.mxu0 0.0
      %892 = vmatpush2.msra.mxu0 0.0
      %893 = vmatprep.mubr.f32.mxu0 0.0
      %v894 = vand.u32 %v159, 4294901760
      %895 = vmatmul.mubr.f32.gmra.mxu0 %v894
      %v896 = vpop.f32.mrf.mxu0
      %v897 = vadd.f32 %v782, %v896
      %v898 = vpop.f32.mrf.mxu0
      %899 = vmatprep.mubr.f32.mxu0 0.0
      %v900 = vand.u32 %v162, 4294901760
      %901 = vmatmul.mubr.f32.gmra.mxu0 %v900
      %v902 = vpop.f32.mrf.mxu0
      %v903 = vadd.f32 %v788, %v902
      %v904 = vpop.f32.mrf.mxu0
      %905 = vmatprep.mubr.f32.mxu0 0.0
      %v906 = vand.u32 %v165, 4294901760
      %907 = vmatmul.mubr.f32.gmra.mxu0 %v906
      %v908 = vpop.f32.mrf.mxu0
      %v909 = vadd.f32 %v794, %v908
      %v910 = vpop.f32.mrf.mxu0
      %911 = vmatprep.mubr.f32.mxu0 0.0
      %v912 = vand.u32 %v168, 4294901760
      %913 = vmatmul.mubr.f32.gmra.mxu0 %v912
      %v914 = vpop.f32.mrf.mxu0
      %v915 = vadd.f32 %v800, %v914
      %v916 = vpop.f32.mrf.mxu0
      %917 = vmatprep.mubr.f32.mxu0 0.0
      %v918 = vand.u32 %v171, 4294901760
      %919 = vmatmul.mubr.f32.gmra.mxu0 %v918
      %v920 = vpop.f32.mrf.mxu0
      %v921 = vadd.f32 %v806, %v920
      %v922 = vpop.f32.mrf.mxu0
      %923 = vmatprep.mubr.f32.mxu0 0.0
      %v924 = vand.u32 %v174, 4294901760
      %925 = vmatmul.mubr.f32.gmra.mxu0 %v924
      %v926 = vpop.f32.mrf.mxu0
      %v927 = vadd.f32 %v812, %v926
      %v928 = vpop.f32.mrf.mxu0
      %929 = vmatprep.mubr.f32.mxu0 0.0
      %v930 = vand.u32 %v177, 4294901760
      %931 = vmatmul.mubr.f32.gmra.mxu0 %v930
      %v932 = vpop.f32.mrf.mxu0
      %v933 = vadd.f32 %v818, %v932
      %v934 = vpop.f32.mrf.mxu0
      %935 = vmatprep.mubr.f32.mxu0 0.0
      %v936 = vand.u32 %v180, 4294901760
      %937 = vmatmul.mubr.f32.gmra.mxu0 %v936
      %v938 = vpop.f32.mrf.mxu0
      %v939 = vadd.f32 %v824, %v938
      %v940 = vpop.f32.mrf.mxu0
      %941 = vdwg.mxu0
      %vm942 = vcmask 261120
      %943 = vst.msk [vmem:[%s145] sm:$0xff] %vm942, %v897
      %944 = vst.msk [vmem:[%s145 + $0x8] sm:$0xff] %vm942, %v903
      %945 = vst.msk [vmem:[%s145 + $0x10] sm:$0xff] %vm942, %v909
      %946 = vst.msk [vmem:[%s145 + $0x18] sm:$0xff] %vm942, %v915
      %947 = vst.msk [vmem:[%s145 + $0x20] sm:$0xff] %vm942, %v921
      %948 = vst.msk [vmem:[%s145 + $0x28] sm:$0xff] %vm942, %v927
      %949 = vst.msk [vmem:[%s145 + $0x30] sm:$0xff] %vm942, %v933
      %950 = vst.msk [vmem:[%s145 + $0x38] sm:$0xff] %vm942, %v939
      %959 = vrot.lane.b32.xlu0 %v897, 32
      %v960 = vpop.permute.xlu0 %959
      %961 = vrot.lane.b32.xlu0 %v903, 32
      %v962 = vpop.permute.xlu0 %961
      %963 = vrot.lane.b32.xlu0 %v909, 32
      %v964 = vpop.permute.xlu0 %963
      %965 = vrot.lane.b32.xlu0 %v915, 32
      %v966 = vpop.permute.xlu0 %965
      %967 = vrot.lane.b32.xlu0 %v921, 32
      %v968 = vpop.permute.xlu0 %967
      %969 = vrot.lane.b32.xlu0 %v927, 32
      %v970 = vpop.permute.xlu0 %969
      %971 = vrot.lane.b32.xlu0 %v933, 32
      %v972 = vpop.permute.xlu0 %971
      %973 = vrot.lane.b32.xlu0 %v939, 32
      %v974 = vpop.permute.xlu0 %973
      %vm983 = vcmask 523520
      %984 = vst.msk [vmem:[%s145] sm:$0xff] %vm983, %v960
      %985 = vst.msk [vmem:[%s145 + $0x8] sm:$0xff] %vm983, %v962
      %986 = vst.msk [vmem:[%s145 + $0x10] sm:$0xff] %vm983, %v964
      %987 = vst.msk [vmem:[%s145 + $0x18] sm:$0xff] %vm983, %v966
      %988 = vst.msk [vmem:[%s145 + $0x20] sm:$0xff] %vm983, %v968
      %989 = vst.msk [vmem:[%s145 + $0x28] sm:$0xff] %vm983, %v970
      %990 = vst.msk [vmem:[%s145 + $0x30] sm:$0xff] %vm983, %v972
      %991 = vst.msk [vmem:[%s145 + $0x38] sm:$0xff] %vm983, %v974
      %s992 = smul.u32 8, %s13
      %p993 = scmp.lt.s32.totalorder %s992, 15
      %s994 = scalar_select %p993, %s992, 15
      %s995 = smul.addr %s994, 8
      %s996 = scalar_lea.vmem %s2, %s995
      // Predicated region
      $region29: #{tpu_custom_call.1} parent=27 // pred_check
        %p997 = pneg %p78
      $region30: #{tpu_custom_call.1} parent=27 // pred_check_branch
        %999 = sbr.rel (%p997) target = $region32
      $region31: #{tpu_custom_call.1} parent=27 // pred_region
        %s1000 = smul.u32 8, %s13
      $region32: #{tpu_custom_call.1} parent=27 // pred_fallthru
        _
    $region28: #{tpu_custom_call.1} parent=5 // pred_fallthru
      _
    %p1001 = scmp.le.s32.totalorder 2, %s8
    // Predicated region
    $region33: #{tpu_custom_call.1} parent=5 // pred_check
      %p1002 = pneg %p1001
    $region34: #{tpu_custom_call.1} parent=5 // pred_check_branch
      %1004 = sbr.rel (%p1002) target = $region36
    $region35: #{tpu_custom_call.1} parent=5 // pred_region
      %s1005 = ssub.s32 %s8, 2
      // Predicated region
      $region37: #{tpu_custom_call.1} parent=35 // pred_check
        %p1006 = pneg %p84
      $region38: #{tpu_custom_call.1} parent=35 // pred_check_branch
        %1008 = sbr.rel (%p1006) target = $region40
      $region39: #{tpu_custom_call.1} parent=35 // pred_region
        %s1009 = smul.u32 8, %s14
        %p1010 = scmp.lt.s32.totalorder %s1009, 15
        %s1011 = scalar_select %p1010, %s1009, 15
        %s1012 = smul.addr %s1011, 8
        %s1013 = scalar_lea.vmem %s2, %s1012
      $region40: #{tpu_custom_call.1} parent=35 // pred_fallthru
        _
    $region36: #{tpu_custom_call.1} parent=5 // pred_fallthru
      _
  $region6: #{tpu_custom_call.1} parent=0 // loop_footer
    %s12 = sadd.s32 1, %s8
  $region7: #{tpu_custom_call.1} parent=0 // loop_footer_branch
    %7 = sbr.rel target = $region3
  $region8: #{tpu_custom_call.1} parent=0 // loop_exit
    _

</llo_original>
